<compile_context>
chip_gen: v5e
topology: v5e:2x2
jax: 0.10.0
libtpu: 0.0.40
codegen_flags: <defaults>
</compile_context>

<pallas_src>
import jax
import jax.numpy as jnp
import numpy as np
from jax.experimental import pallas as pl
from jax.experimental.pallas import tpu as pltpu

# ---- small, module-consistent shapes -----------------------------------
B = 2            # batch
S = 8            # sequence length (stand-in for MAXLEN-truncated seq)
H = 256          # hidden size (stand-in for 768)
MAXLEN = 16      # positional-embedding table size (stand-in for 256)
NUM_PRED = 4     # len(predicate2id) is 0 in the source script; use 4 so the
                 # obj head is non-degenerate
LANE = 128       # lane-padded width for the narrow output heads
EPS = 1e-12


def re_kernel(x_ref, add_ref, ln_w_ref, ln_b_ref,
              w_sub_ref, b_sub_ref, w_lin_ref, b_lin_ref,
              w_obj_ref, b_obj_ref,
              sub_ref, obj_ref):
    """Single grid step over the flattened (B*S, H) activation slab.

    x_ref      : (BS, H)    f32  BERT hidden states (flattened)
    add_ref    : (BS, H)    f32  start_emb + start_out + end_emb + end_out,
                                 broadcast per batch row
    ln_w/ln_b  : (1, H)     f32  BertLayerNorm params
    w_sub      : (H, 128)   bf16 (cols [0:2] real, rest zero)
    b_sub      : (1, 128)   f32
    w_lin      : (H, H)     bf16
    b_lin      : (1, H)     f32
    w_obj      : (H, 128)   bf16 (cols [0:2P] real, rest zero)
    b_obj      : (1, 128)   f32
    sub_ref    : (BS, 128)  f32  lane-padded subject logits
    obj_ref    : (BS, 128)  f32  lane-padded object logits
    """
    x = x_ref[...]                                     # (BS, H) f32
    x_bf = x.astype(jnp.bfloat16)

    # --- subject head: logits_sub = out @ W_sub + b_sub (lane-padded) ----
    sub_ref[...] = (
        jnp.dot(x_bf, w_sub_ref[...], preferred_element_type=jnp.float32)
        + b_sub_ref[...]
    )

    # --- condition on subject span (row-broadcast add done in wrapper) ---
    x1 = x + add_ref[...]                              # (BS, H) f32

    # --- BertLayerNorm (f32, one-pass variance) ---------------------------
    mean = jnp.mean(x1, axis=-1, keepdims=True)
    mean_sq = jnp.mean(x1 * x1, axis=-1, keepdims=True)
    var = mean_sq - mean * mean
    x_norm = (x1 - mean) * jax.lax.rsqrt(var + EPS)
    x_norm = ln_w_ref[...] * x_norm + ln_b_ref[...]

    # --- relu(linear(.)) --------------------------------------------------
    h = jnp.dot(x_norm.astype(jnp.bfloat16), w_lin_ref[...],
                preferred_element_type=jnp.float32) + b_lin_ref[...]
    h = jnp.maximum(h, 0.0)

    # --- object head (lane-padded) ---------------------------------------
    obj_ref[...] = (
        jnp.dot(h.astype(jnp.bfloat16), w_obj_ref[...],
                preferred_element_type=jnp.float32)
        + b_obj_ref[...]
    )


def prep_kernel_params(params):
    """Pad the narrow heads to 128 lanes (zero-fill) and cast weights to bf16."""
    Hsz = params["w_lin"].shape[0]
    P2 = params["w_obj"].shape[1]

    def pad_cols(a, width):
        return jnp.pad(a, ((0, 0), (0, width - a.shape[1])))

    return {
        "ln_w": params["ln_w"].astype(jnp.float32),
        "ln_b": params["ln_b"].astype(jnp.float32),
        "w_sub": pad_cols(params["w_sub"], LANE).astype(jnp.bfloat16),
        "b_sub": pad_cols(params["b_sub"], LANE).astype(jnp.float32),
        "w_lin": params["w_lin"].astype(jnp.bfloat16),
        "b_lin": params["b_lin"].astype(jnp.float32),
        "w_obj": pad_cols(params["w_obj"], LANE).astype(jnp.bfloat16),
        "b_obj": pad_cols(params["b_obj"], LANE).astype(jnp.float32),
        "_p2": P2,
        "_h": Hsz,
    }


def re_model_forward(out, sub_ids, params):
    """Glue (gathers / embedding lookups) in JAX, hot path in one Pallas call."""
    Bsz, Ssz, Hsz = out.shape
    BS = Bsz * Ssz
    kp = prep_kernel_params(params)
    P2 = kp["_p2"]

    # start/end positional embeddings + gathered hidden states (tiny XLA ops)
    start_emb = params["pos_emb"][sub_ids[:, 0]]               # (B, H)
    end_emb = params["pos_emb"][sub_ids[:, 1]]                 # (B, H)
    start_out = out[jnp.arange(Bsz), sub_ids[:, 0]]            # (B, H)
    end_out = out[jnp.arange(Bsz), sub_ids[:, 1]]              # (B, H)
    add_vec = start_emb + start_out + end_emb + end_out        # (B, H)
    add_full = jnp.broadcast_to(
        add_vec[:, None, :], (Bsz, Ssz, Hsz)).reshape(BS, Hsz)

    out_flat = out.reshape(BS, Hsz)

    full = lambda shape: pl.BlockSpec(shape, lambda i: (0, 0))

    sub_pad, obj_pad = pl.pallas_call(
        re_kernel,
        out_shape=(
            jax.ShapeDtypeStruct((BS, LANE), jnp.float32),
            jax.ShapeDtypeStruct((BS, LANE), jnp.float32),
        ),
        grid_spec=pltpu.PrefetchScalarGridSpec(
            num_scalar_prefetch=0,
            grid=(1,),                       # single step: everything fits VMEM
            in_specs=[
                full((BS, Hsz)),             # out_flat
                full((BS, Hsz)),             # add_full
                full((1, Hsz)),              # ln_w
                full((1, Hsz)),              # ln_b
                full((Hsz, LANE)),           # w_sub (padded, bf16)
                full((1, LANE)),             # b_sub (padded)
                full((Hsz, Hsz)),            # w_lin (bf16)
                full((1, Hsz)),              # b_lin
                full((Hsz, LANE)),           # w_obj (padded, bf16)
                full((1, LANE)),             # b_obj (padded)
            ],
            out_specs=[
                full((BS, LANE)),
                full((BS, LANE)),
            ],
        ),
        compiler_params=pltpu.CompilerParams(
            dimension_semantics=("arbitrary",)),
    )(out_flat, add_full,
      kp["ln_w"], kp["ln_b"],
      kp["w_sub"], kp["b_sub"],
      kp["w_lin"], kp["b_lin"],
      kp["w_obj"], kp["b_obj"])

    # slice off zero-padded lanes; obj_preds = logits_obj.view(-1, S, P, 2)
    logits_sub = sub_pad[:, :2].reshape(Bsz, Ssz, 2)
    obj_preds = obj_pad[:, :P2].reshape(Bsz, Ssz, NUM_PRED, 2)
    return logits_sub, obj_preds


def reference_forward(out, sub_ids, params):
    """Pure-JAX f32 reference mirroring the PyTorch forward (eval mode)."""
    Bsz, Ssz, Hsz = out.shape
    logits_sub = out @ params["w_sub"] + params["b_sub"]
    start_emb = params["pos_emb"][sub_ids[:, 0]][:, None, :]
    end_emb = params["pos_emb"][sub_ids[:, 1]][:, None, :]
    start_out = out[jnp.arange(Bsz), sub_ids[:, 0]][:, None, :]
    end_out = out[jnp.arange(Bsz), sub_ids[:, 1]][:, None, :]
    out1 = out + start_emb + start_out + end_emb + end_out
    mean = out1.mean(-1, keepdims=True)
    var = ((out1 - mean) ** 2).mean(-1, keepdims=True)
    out1 = (out1 - mean) / jnp.sqrt(var + EPS)
    out1 = params["ln_w"] * out1 + params["ln_b"]
    out1 = jnp.maximum(out1 @ params["w_lin"] + params["b_lin"], 0.0)
    logits_obj = out1 @ params["w_obj"] + params["b_obj"]
    return logits_sub, logits_obj.reshape(-1, Ssz, NUM_PRED, 2)


def make_params(key):
    ks = jax.random.split(key, 8)
    scale = 0.02
    return {
        "pos_emb": scale * jax.random.normal(ks[0], (MAXLEN, H), jnp.float32),
        "w_sub":   scale * jax.random.normal(ks[1], (H, 2), jnp.float32),
        "b_sub":   scale * jax.random.normal(ks[2], (1, 2), jnp.float32),
        "w_lin":   scale * jax.random.normal(ks[3], (H, H), jnp.float32),
        "b_lin":   scale * jax.random.normal(ks[4], (1, H), jnp.float32),
        "w_obj":   scale * jax.random.normal(ks[5], (H, 2 * NUM_PRED), jnp.float32),
        "b_obj":   scale * jax.random.normal(ks[6], (1, 2 * NUM_PRED), jnp.float32),
        "ln_w":    jnp.ones((1, H), jnp.float32),
        "ln_b":    jnp.zeros((1, H), jnp.float32),
    }


if __name__ == "__main__":
    key = jax.random.PRNGKey(0)
    k_out, k_sub, k_par = jax.random.split(key, 3)

    # "BERT output" hidden states and subject span ids
    out = jax.random.normal(k_out, (B, S, H), jnp.float32)
    sub_ids = jax.random.randint(k_sub, (B, 2), 0, min(S, MAXLEN), jnp.int32)
    params = make_params(k_par)

    logits_sub, obj_preds = re_model_forward(out, sub_ids, params)
    logits_sub = jax.block_until_ready(logits_sub)
    obj_preds = jax.block_until_ready(obj_preds)

    ref_sub, ref_obj = reference_forward(out, sub_ids, params)
    np.testing.assert_allclose(np.asarray(logits_sub), np.asarray(ref_sub),
                               rtol=1e-2, atol=1e-2)
    np.testing.assert_allclose(np.asarray(obj_preds), np.asarray(ref_obj),
                               rtol=1e-2, atol=1e-2)

    assert logits_sub.shape == (B, S, 2)
    assert obj_preds.shape == (B, S, NUM_PRED, 2)
    print("KERNEL_OK")
</pallas_src>

<mosaic_0001>
module attributes {stable_mosaic.version = 11 : i64} {
  func.func @re_kernel(%arg0: i32, %arg1: memref<16x256xf32, #tpu.memory_space<vmem>>, %arg2: memref<16x256xf32, #tpu.memory_space<vmem>>, %arg3: memref<1x256xf32, #tpu.memory_space<vmem>>, %arg4: memref<1x256xf32, #tpu.memory_space<vmem>>, %arg5: memref<256x128xbf16, #tpu.memory_space<vmem>>, %arg6: memref<1x128xf32, #tpu.memory_space<vmem>>, %arg7: memref<256x256xbf16, #tpu.memory_space<vmem>>, %arg8: memref<1x256xf32, #tpu.memory_space<vmem>>, %arg9: memref<256x128xbf16, #tpu.memory_space<vmem>>, %arg10: memref<1x128xf32, #tpu.memory_space<vmem>>, %arg11: memref<16x128xf32, #tpu.memory_space<vmem>>, %arg12: memref<16x128xf32, #tpu.memory_space<vmem>>) attributes {dimension_semantics = [#tpu.dimension_semantics<arbitrary>], iteration_bounds = array<i64: 1>, scalar_prefetch = 0 : i64, scratch_operands = 0 : i64, tpu.core_type = #tpu.core_type<tc>, window_params = [{pipeline_mode = #tpu.pipeline_mode<synchronous>, transform_indices = @transform_0, window_bounds = array<i64: 16, 256>}, {pipeline_mode = #tpu.pipeline_mode<synchronous>, transform_indices = @transform_1, window_bounds = array<i64: 16, 256>}, {pipeline_mode = #tpu.pipeline_mode<synchronous>, transform_indices = @transform_2, window_bounds = array<i64: 1, 256>}, {pipeline_mode = #tpu.pipeline_mode<synchronous>, transform_indices = @transform_3, window_bounds = array<i64: 1, 256>}, {pipeline_mode = #tpu.pipeline_mode<synchronous>, transform_indices = @transform_4, window_bounds = array<i64: 256, 128>}, {pipeline_mode = #tpu.pipeline_mode<synchronous>, transform_indices = @transform_5, window_bounds = array<i64: 1, 128>}, {pipeline_mode = #tpu.pipeline_mode<synchronous>, transform_indices = @transform_6, window_bounds = array<i64: 256, 256>}, {pipeline_mode = #tpu.pipeline_mode<synchronous>, transform_indices = @transform_7, window_bounds = array<i64: 1, 256>}, {pipeline_mode = #tpu.pipeline_mode<synchronous>, transform_indices = @transform_8, window_bounds = array<i64: 256, 128>}, {pipeline_mode = #tpu.pipeline_mode<synchronous>, transform_indices = @transform_9, window_bounds = array<i64: 1, 128>}, {pipeline_mode = #tpu.pipeline_mode<synchronous>, transform_indices = @transform_10, window_bounds = array<i64: 16, 128>}, {pipeline_mode = #tpu.pipeline_mode<synchronous>, transform_indices = @transform_11, window_bounds = array<i64: 16, 128>}]} {
    %c0 = arith.constant 0 : index
    %c0_0 = arith.constant 0 : index
    %0 = vector.load %arg1[%c0, %c0_0] : memref<16x256xf32, #tpu.memory_space<vmem>>, vector<16x256xf32>
    %1 = arith.truncf %0 : vector<16x256xf32> to vector<16x256xbf16>
    %c0_1 = arith.constant 0 : index
    %c0_2 = arith.constant 0 : index
    %2 = vector.load %arg5[%c0_1, %c0_2] : memref<256x128xbf16, #tpu.memory_space<vmem>>, vector<256x128xbf16>
    %cst = arith.constant dense<0.000000e+00> : vector<16x128xf32>
    %3 = tpu.matmul %1, %2, %cst {dimension_numbers = #tpu.dot_dimension_numbers<[1], [0], [0], [1], [0, 0, 1, 1], [], []>} : vector<16x256xbf16>, vector<256x128xbf16>, vector<16x128xf32> -> vector<16x128xf32>
    %c0_3 = arith.constant 0 : index
    %c0_4 = arith.constant 0 : index
    %4 = vector.load %arg6[%c0_3, %c0_4] : memref<1x128xf32, #tpu.memory_space<vmem>>, vector<1x128xf32>
    %5 = vector.broadcast %4 : vector<1x128xf32> to vector<16x128xf32>
    %6 = arith.addf %3, %5 : vector<16x128xf32>
    %c0_5 = arith.constant 0 : index
    %c0_6 = arith.constant 0 : index
    %7 = vector.load %arg11[%c0_5, %c0_6] : memref<16x128xf32, #tpu.memory_space<vmem>>, vector<16x128xf32>
    tpu.vector_store %arg11[%c0_5, %c0_6], %6 {strides = array<i32>} : memref<16x128xf32, #tpu.memory_space<vmem>>, vector<16x128xf32>,
    %c0_7 = arith.constant 0 : index
    %c0_8 = arith.constant 0 : index
    %8 = vector.load %arg2[%c0_7, %c0_8] : memref<16x256xf32, #tpu.memory_space<vmem>>, vector<16x256xf32>
    %9 = arith.addf %0, %8 : vector<16x256xf32>
    %cst_9 = arith.constant dense<0.000000e+00> : vector<16xf32>
    %10 = vector.multi_reduction <add>, %9, %cst_9 [1] : vector<16x256xf32> to vector<16xf32>
    %11 = vector.shape_cast %10 : vector<16xf32> to vector<16x1xf32>
    %cst_10 = arith.constant 2.560000e+02 : f32
    %12 = vector.broadcast %cst_10 : f32 to vector<16x1xf32>
    %13 = arith.divf %11, %12 : vector<16x1xf32>
    %14 = arith.mulf %9, %9 : vector<16x256xf32>
    %cst_11 = arith.constant dense<0.000000e+00> : vector<16xf32>
    %15 = vector.multi_reduction <add>, %14, %cst_11 [1] : vector<16x256xf32> to vector<16xf32>
    %16 = vector.shape_cast %15 : vector<16xf32> to vector<16x1xf32>
    %cst_12 = arith.constant 2.560000e+02 : f32
    %17 = vector.broadcast %cst_12 : f32 to vector<16x1xf32>
    %18 = arith.divf %16, %17 : vector<16x1xf32>
    %19 = arith.mulf %13, %13 : vector<16x1xf32>
    %20 = arith.subf %18, %19 : vector<16x1xf32>
    %21 = vector.broadcast %13 : vector<16x1xf32> to vector<16x256xf32>
    %22 = arith.subf %9, %21 : vector<16x256xf32>
    %cst_13 = arith.constant 9.99999996E-13 : f32
    %23 = vector.broadcast %cst_13 : f32 to vector<16x1xf32>
    %24 = arith.addf %20, %23 : vector<16x1xf32>
    %25 = math.rsqrt %24 : vector<16x1xf32>
    %26 = vector.broadcast %25 : vector<16x1xf32> to vector<16x256xf32>
    %27 = arith.mulf %22, %26 : vector<16x256xf32>
    %c0_14 = arith.constant 0 : index
    %c0_15 = arith.constant 0 : index
    %28 = vector.load %arg3[%c0_14, %c0_15] : memref<1x256xf32, #tpu.memory_space<vmem>>, vector<1x256xf32>
    %29 = vector.broadcast %28 : vector<1x256xf32> to vector<16x256xf32>
    %30 = arith.mulf %29, %27 : vector<16x256xf32>
    %c0_16 = arith.constant 0 : index
    %c0_17 = arith.constant 0 : index
    %31 = vector.load %arg4[%c0_16, %c0_17] : memref<1x256xf32, #tpu.memory_space<vmem>>, vector<1x256xf32>
    %32 = vector.broadcast %31 : vector<1x256xf32> to vector<16x256xf32>
    %33 = arith.addf %30, %32 : vector<16x256xf32>
    %34 = arith.truncf %33 : vector<16x256xf32> to vector<16x256xbf16>
    %c0_18 = arith.constant 0 : index
    %c0_19 = arith.constant 0 : index
    %35 = vector.load %arg7[%c0_18, %c0_19] : memref<256x256xbf16, #tpu.memory_space<vmem>>, vector<256x256xbf16>
    %cst_20 = arith.constant dense<0.000000e+00> : vector<16x256xf32>
    %36 = tpu.matmul %34, %35, %cst_20 {dimension_numbers = #tpu.dot_dimension_numbers<[1], [0], [0], [1], [0, 0, 1, 1], [], []>} : vector<16x256xbf16>, vector<256x256xbf16>, vector<16x256xf32> -> vector<16x256xf32>
    %c0_21 = arith.constant 0 : index
    %c0_22 = arith.constant 0 : index
    %37 = vector.load %arg8[%c0_21, %c0_22] : memref<1x256xf32, #tpu.memory_space<vmem>>, vector<1x256xf32>
    %38 = vector.broadcast %37 : vector<1x256xf32> to vector<16x256xf32>
    %39 = arith.addf %36, %38 : vector<16x256xf32>
    %cst_23 = arith.constant 0.000000e+00 : f32
    %40 = vector.broadcast %cst_23 : f32 to vector<16x256xf32>
    %41 = arith.maximumf %39, %40 : vector<16x256xf32>
    %42 = arith.truncf %41 : vector<16x256xf32> to vector<16x256xbf16>
    %c0_24 = arith.constant 0 : index
    %c0_25 = arith.constant 0 : index
    %43 = vector.load %arg9[%c0_24, %c0_25] : memref<256x128xbf16, #tpu.memory_space<vmem>>, vector<256x128xbf16>
    %cst_26 = arith.constant dense<0.000000e+00> : vector<16x128xf32>
    %44 = tpu.matmul %42, %43, %cst_26 {dimension_numbers = #tpu.dot_dimension_numbers<[1], [0], [0], [1], [0, 0, 1, 1], [], []>} : vector<16x256xbf16>, vector<256x128xbf16>, vector<16x128xf32> -> vector<16x128xf32>
    %c0_27 = arith.constant 0 : index
    %c0_28 = arith.constant 0 : index
    %45 = vector.load %arg10[%c0_27, %c0_28] : memref<1x128xf32, #tpu.memory_space<vmem>>, vector<1x128xf32>
    %46 = vector.broadcast %45 : vector<1x128xf32> to vector<16x128xf32>
    %47 = arith.addf %44, %46 : vector<16x128xf32>
    %c0_29 = arith.constant 0 : index
    %c0_30 = arith.constant 0 : index
    %48 = vector.load %arg12[%c0_29, %c0_30] : memref<16x128xf32, #tpu.memory_space<vmem>>, vector<16x128xf32>
    tpu.vector_store %arg12[%c0_29, %c0_30], %47 {strides = array<i32>} : memref<16x128xf32, #tpu.memory_space<vmem>>, vector<16x128xf32>,
    return
  }
  func.func @transform_0(%arg0: i32) -> (i32, i32) {
    %c0_i32 = arith.constant 0 : i32
    %c0_i32_0 = arith.constant 0 : i32
    %c0_i32_1 = arith.constant 0 : i32
    return %c0_i32, %c0_i32_0 : i32, i32
  }
  func.func @transform_1(%arg0: i32) -> (i32, i32) {
    %c0_i32 = arith.constant 0 : i32
    %c0_i32_0 = arith.constant 0 : i32
    %c0_i32_1 = arith.constant 0 : i32
    return %c0_i32, %c0_i32_0 : i32, i32
  }
  func.func @transform_2(%arg0: i32) -> (i32, i32) {
    %c0_i32 = arith.constant 0 : i32
    %c0_i32_0 = arith.constant 0 : i32
    %c0_i32_1 = arith.constant 0 : i32
    return %c0_i32, %c0_i32_0 : i32, i32
  }
  func.func @transform_3(%arg0: i32) -> (i32, i32) {
    %c0_i32 = arith.constant 0 : i32
    %c0_i32_0 = arith.constant 0 : i32
    %c0_i32_1 = arith.constant 0 : i32
    return %c0_i32, %c0_i32_0 : i32, i32
  }
  func.func @transform_4(%arg0: i32) -> (i32, i32) {
    %c0_i32 = arith.constant 0 : i32
    %c0_i32_0 = arith.constant 0 : i32
    %c0_i32_1 = arith.constant 0 : i32
    return %c0_i32, %c0_i32_0 : i32, i32
  }
  func.func @transform_5(%arg0: i32) -> (i32, i32) {
    %c0_i32 = arith.constant 0 : i32
    %c0_i32_0 = arith.constant 0 : i32
    %c0_i32_1 = arith.constant 0 : i32
    return %c0_i32, %c0_i32_0 : i32, i32
  }
  func.func @transform_6(%arg0: i32) -> (i32, i32) {
    %c0_i32 = arith.constant 0 : i32
    %c0_i32_0 = arith.constant 0 : i32
    %c0_i32_1 = arith.constant 0 : i32
    return %c0_i32, %c0_i32_0 : i32, i32
  }
  func.func @transform_7(%arg0: i32) -> (i32, i32) {
    %c0_i32 = arith.constant 0 : i32
    %c0_i32_0 = arith.constant 0 : i32
    %c0_i32_1 = arith.constant 0 : i32
    return %c0_i32, %c0_i32_0 : i32, i32
  }
  func.func @transform_8(%arg0: i32) -> (i32, i32) {
    %c0_i32 = arith.constant 0 : i32
    %c0_i32_0 = arith.constant 0 : i32
    %c0_i32_1 = arith.constant 0 : i32
    return %c0_i32, %c0_i32_0 : i32, i32
  }
  func.func @transform_9(%arg0: i32) -> (i32, i32) {
    %c0_i32 = arith.constant 0 : i32
    %c0_i32_0 = arith.constant 0 : i32
    %c0_i32_1 = arith.constant 0 : i32
    return %c0_i32, %c0_i32_0 : i32, i32
  }
  func.func @transform_10(%arg0: i32) -> (i32, i32) {
    %c0_i32 = arith.constant 0 : i32
    %c0_i32_0 = arith.constant 0 : i32
    %c0_i32_1 = arith.constant 0 : i32
    return %c0_i32, %c0_i32_0 : i32, i32
  }
  func.func @transform_11(%arg0: i32) -> (i32, i32) {
    %c0_i32 = arith.constant 0 : i32
    %c0_i32_0 = arith.constant 0 : i32
    %c0_i32_1 = arith.constant 0 : i32
    return %c0_i32, %c0_i32_0 : i32, i32
  }
}

</mosaic_0001>

<llo_original>
// kernel: tpu_custom_call.1
$region0: #{tpu_custom_call.1}
  #allocation0 [shape = 'u32[]', space=smem, size = 0x4, offset = 0x4, fixed_abs, tag = 'smem constant byte address 0x4 - core index']
  #allocation1 [shape = 'u32[72,128]{1,0:T(1,128)}', space=vmem, size = 0x9000, scoped, tag = 'internal scratch']
  %s0 = inlined_call_operand.hbm [shape: f32[16,256], index: 0, kind: input, shape index: {}]
  %s1 = inlined_call_operand.hbm [shape: f32[16,256], index: 1, kind: input, shape index: {}]
  %s2 = inlined_call_operand.hbm [shape: f32[1,256], index: 2, kind: input, shape index: {}]
  %s3 = inlined_call_operand.vmem [shape: f32[1,256], index: 3, kind: input, shape index: {}]
  %s4 = inlined_call_operand.hbm [shape: bf16[256,128], index: 4, kind: input, shape index: {}]
  %s5 = inlined_call_operand.hbm [shape: f32[1,128], index: 5, kind: input, shape index: {}]
  %s6 = inlined_call_operand.hbm [shape: bf16[256,256], index: 6, kind: input, shape index: {}]
  %s7 = inlined_call_operand.vmem [shape: f32[1,256], index: 7, kind: input, shape index: {}]
  %s8 = inlined_call_operand.hbm [shape: bf16[256,128], index: 8, kind: input, shape index: {}]
  %s9 = inlined_call_operand.vmem [shape: f32[1,128], index: 9, kind: input, shape index: {}]
  %s10 = inlined_call_operand.hbm [shape: f32[16,128], index: 10, kind: output, shape index: {0}]
  %s11 = inlined_call_operand.hbm [shape: f32[16,128], index: 11, kind: output, shape index: {1}]
  %12 = xla_tuple %s10, %s11
  %s13 = sld [smem:[#allocation0]]
  $region86: #{tpu_custom_call.1} parent=0
    _
  %s15 = ssub.s32 1, %s13
  %s16 = scalar_select 0, %s15, %s13
  $region1: #{tpu_custom_call.1} parent=0
    #allocation2 [shape = 'u8[16384]{0}', space=vmem, size = 0x4000, scoped, tag = 'input window, operand 0, single buffered']
    #allocation3 [shape = 's32[1]{0}', space=sflag, size = 0x4, scoped, tag = 'scoped memory for tpu_custom_call.1']
    #allocation4 [shape = 's32[1]{0}', space=sflag, size = 0x4, scoped, tag = 'scoped memory for tpu_custom_call.1']
    #allocation5 [shape = 'u8[16384]{0}', space=vmem, size = 0x4000, scoped, tag = 'input window, operand 1, single buffered']
    #allocation6 [shape = 's32[1]{0}', space=sflag, size = 0x4, scoped, tag = 'scoped memory for tpu_custom_call.1']
    #allocation7 [shape = 'u8[1024]{0}', space=vmem, size = 0x400, scoped, tag = 'input window, operand 2, single buffered']
    #allocation8 [shape = 'u8[65536]{0}', space=vmem, size = 0x10000, scoped, tag = 'input window, operand 4, single buffered']
    #allocation9 [shape = 's32[1]{0}', space=sflag, size = 0x4, scoped, tag = 'scoped memory for tpu_custom_call.1']
    #allocation10 [shape = 'u8[512]{0}', space=vmem, size = 0x400, scoped, tag = 'input window, operand 5, single buffered']
    #allocation11 [shape = 'u8[131072]{0}', space=vmem, size = 0x20000, scoped, tag = 'input window, operand 6, single buffered']
    #allocation12 [shape = 's32[1]{0}', space=sflag, size = 0x4, scoped, tag = 'scoped memory for tpu_custom_call.1']
    #allocation13 [shape = 'u8[65536]{0}', space=vmem, size = 0x10000, scoped, tag = 'input window, operand 8, single buffered']
    #allocation14 [shape = 'u8[8192]{0}', space=vmem, size = 0x2000, scoped, tag = 'output window, operand 0, single buffered']
    #allocation15 [shape = 'u8[8192]{0}', space=vmem, size = 0x2000, scoped, tag = 'output window, operand 1, single buffered']
    #allocation16 [shape = 's32[1]{0}', space=sflag, size = 0x4, scoped, tag = 'scoped memory for tpu_custom_call.1']
    %17 = vsyncpa [#allocation3], 0
    %18 = vsyncpa [#allocation6], 0
    %19 = vsyncpa [#allocation9], 0
    %20 = vsyncpa [#allocation12], 0
    %21 = vsyncpa [#allocation4], 0
    %22 = vsyncpa [#allocation16], 0
    // Predicated region
    $region2: #{tpu_custom_call.1} parent=1 // pred_check
      _
    $region3: #{tpu_custom_call.1} parent=1 // pred_check_branch
      %24 = sbr.rel (0) target = $region5
    $region4: #{tpu_custom_call.1} parent=1 // pred_region
      %26 = vsyncadd [#allocation3], 0
      %s27 = sshll.u32 %s0, 4
      %s28 = int_to_ptr.hbm [resolvable:$true] %s27
      %s29 = sshll.u32 [#allocation2], 4
      %s30 = int_to_ptr.vmem [resolvable:$true] %s29
      %35 = dma.hbm_to_vmem [thread:$0]  %s28, 512, %s30, [#allocation3], 256, 256, 16
    $region5: #{tpu_custom_call.1} parent=1 // pred_fallthru
      _
    // Predicated region
    $region6: #{tpu_custom_call.1} parent=1 // pred_check
      _
    $region7: #{tpu_custom_call.1} parent=1 // pred_check_branch
      %37 = sbr.rel (0) target = $region9
    $region8: #{tpu_custom_call.1} parent=1 // pred_region
      %39 = vsyncadd [#allocation6], 0
      %s40 = sshll.u32 %s1, 4
      %s41 = int_to_ptr.hbm [resolvable:$true] %s40
      %s42 = sshll.u32 [#allocation5], 4
      %s43 = int_to_ptr.vmem [resolvable:$true] %s42
      %48 = dma.hbm_to_vmem [thread:$0]  %s41, 512, %s43, [#allocation6], 256, 256, 16
    $region9: #{tpu_custom_call.1} parent=1 // pred_fallthru
      _
    // Predicated region
    $region10: #{tpu_custom_call.1} parent=1 // pred_check
      _
    $region11: #{tpu_custom_call.1} parent=1 // pred_check_branch
      %50 = sbr.rel (0) target = $region13
    $region12: #{tpu_custom_call.1} parent=1 // pred_region
      %52 = vsyncadd [#allocation6], 0
      %s54 = sshll.u32 %s2, 4
      %s55 = int_to_ptr.hbm [resolvable:$true] %s54
      %s56 = sshll.u32 [#allocation7], 4
      %s57 = int_to_ptr.vmem [resolvable:$true] %s56
      %59 = dma.hbm_to_vmem [thread:$0]  %s55, 32, %s57, [#allocation6]
    $region13: #{tpu_custom_call.1} parent=1 // pred_fallthru
      _
    // Predicated region
    $region14: #{tpu_custom_call.1} parent=1 // pred_check
      _
    $region15: #{tpu_custom_call.1} parent=1 // pred_check_branch
      %61 = sbr.rel (0) target = $region17
    $region16: #{tpu_custom_call.1} parent=1 // pred_region
      _
    $region17: #{tpu_custom_call.1} parent=1 // pred_fallthru
      _
    // Predicated region
    $region18: #{tpu_custom_call.1} parent=1 // pred_check
      _
    $region19: #{tpu_custom_call.1} parent=1 // pred_check_branch
      %63 = sbr.rel (0) target = $region21
    $region20: #{tpu_custom_call.1} parent=1 // pred_region
      %65 = vsyncadd [#allocation9], 0
      %s66 = sshll.u32 %s4, 4
      %s67 = int_to_ptr.hbm [resolvable:$true] %s66
      %s68 = sshll.u32 [#allocation8], 4
      %s69 = int_to_ptr.vmem [resolvable:$true] %s68
      %74 = dma.hbm_to_vmem [thread:$0]  %s67, 2048, %s69, [#allocation9], 64, 64, 4
    $region21: #{tpu_custom_call.1} parent=1 // pred_fallthru
      _
    // Predicated region
    $region22: #{tpu_custom_call.1} parent=1 // pred_check
      _
    $region23: #{tpu_custom_call.1} parent=1 // pred_check_branch
      %76 = sbr.rel (0) target = $region25
    $region24: #{tpu_custom_call.1} parent=1 // pred_region
      %78 = vsyncadd [#allocation9], 0
      %s80 = sshll.u32 %s5, 4
      %s81 = int_to_ptr.hbm [resolvable:$true] %s80
      %s82 = sshll.u32 [#allocation10], 4
      %s83 = int_to_ptr.vmem [resolvable:$true] %s82
      %85 = dma.hbm_to_vmem [thread:$0]  %s81, 16, %s83, [#allocation9]
    $region25: #{tpu_custom_call.1} parent=1 // pred_fallthru
      _
    // Predicated region
    $region26: #{tpu_custom_call.1} parent=1 // pred_check
      _
    $region27: #{tpu_custom_call.1} parent=1 // pred_check_branch
      %87 = sbr.rel (0) target = $region29
    $region28: #{tpu_custom_call.1} parent=1 // pred_region
      %89 = vsyncadd [#allocation12], 0
      %s90 = sshll.u32 %s6, 4
      %s91 = int_to_ptr.hbm [resolvable:$true] %s90
      %s92 = sshll.u32 [#allocation11], 4
      %s93 = int_to_ptr.vmem [resolvable:$true] %s92
      %98 = dma.hbm_to_vmem [thread:$0]  %s91, 4096, %s93, [#allocation12], 128, 128, 8
    $region29: #{tpu_custom_call.1} parent=1 // pred_fallthru
      _
    // Predicated region
    $region30: #{tpu_custom_call.1} parent=1 // pred_check
      _
    $region31: #{tpu_custom_call.1} parent=1 // pred_check_branch
      %100 = sbr.rel (0) target = $region33
    $region32: #{tpu_custom_call.1} parent=1 // pred_region
      _
    $region33: #{tpu_custom_call.1} parent=1 // pred_fallthru
      _
    // Predicated region
    $region34: #{tpu_custom_call.1} parent=1 // pred_check
      _
    $region35: #{tpu_custom_call.1} parent=1 // pred_check_branch
      %102 = sbr.rel (0) target = $region37
    $region36: #{tpu_custom_call.1} parent=1 // pred_region
      %104 = vsyncadd [#allocation12], 0
      %s105 = sshll.u32 %s8, 4
      %s106 = int_to_ptr.hbm [resolvable:$true] %s105
      %s107 = sshll.u32 [#allocation13], 4
      %s108 = int_to_ptr.vmem [resolvable:$true] %s107
      %113 = dma.hbm_to_vmem [thread:$0]  %s106, 2048, %s108, [#allocation12], 64, 64, 4
    $region37: #{tpu_custom_call.1} parent=1 // pred_fallthru
      _
    // Predicated region
    $region38: #{tpu_custom_call.1} parent=1 // pred_check
      _
    $region39: #{tpu_custom_call.1} parent=1 // pred_check_branch
      %115 = sbr.rel (0) target = $region41
    $region40: #{tpu_custom_call.1} parent=1 // pred_region
      _
    $region41: #{tpu_custom_call.1} parent=1 // pred_fallthru
      _
    // Predicated region
    $region42: #{tpu_custom_call.1} parent=1 // pred_check
      _
    $region43: #{tpu_custom_call.1} parent=1 // pred_check_branch
      %117 = sbr.rel (0) target = $region45
    $region44: #{tpu_custom_call.1} parent=1 // pred_region
      %119 = dma.done [#allocation3], 512
    $region45: #{tpu_custom_call.1} parent=1 // pred_fallthru
      _
    // Predicated region
    $region46: #{tpu_custom_call.1} parent=1 // pred_check
      _
    $region47: #{tpu_custom_call.1} parent=1 // pred_check_branch
      %121 = sbr.rel (0) target = $region49
    $region48: #{tpu_custom_call.1} parent=1 // pred_region
      %123 = dma.done [#allocation6], 512
    $region49: #{tpu_custom_call.1} parent=1 // pred_fallthru
      _
    // Predicated region
    $region50: #{tpu_custom_call.1} parent=1 // pred_check
      _
    $region51: #{tpu_custom_call.1} parent=1 // pred_check_branch
      %125 = sbr.rel (0) target = $region53
    $region52: #{tpu_custom_call.1} parent=1 // pred_region
      %127 = dma.done [#allocation6], 32
    $region53: #{tpu_custom_call.1} parent=1 // pred_fallthru
      _
    // Predicated region
    $region54: #{tpu_custom_call.1} parent=1 // pred_check
      _
    $region55: #{tpu_custom_call.1} parent=1 // pred_check_branch
      %129 = sbr.rel (0) target = $region57
    $region56: #{tpu_custom_call.1} parent=1 // pred_region
      %131 = dma.done [#allocation9], 2048
    $region57: #{tpu_custom_call.1} parent=1 // pred_fallthru
      _
    // Predicated region
    $region58: #{tpu_custom_call.1} parent=1 // pred_check
      _
    $region59: #{tpu_custom_call.1} parent=1 // pred_check_branch
      %133 = sbr.rel (0) target = $region61
    $region60: #{tpu_custom_call.1} parent=1 // pred_region
      %135 = dma.done [#allocation9], 16
    $region61: #{tpu_custom_call.1} parent=1 // pred_fallthru
      _
    // Predicated region
    $region62: #{tpu_custom_call.1} parent=1 // pred_check
      _
    $region63: #{tpu_custom_call.1} parent=1 // pred_check_branch
      %137 = sbr.rel (0) target = $region65
    $region64: #{tpu_custom_call.1} parent=1 // pred_region
      %139 = dma.done [#allocation12], 4096
    $region65: #{tpu_custom_call.1} parent=1 // pred_fallthru
      _
    // Predicated region
    $region66: #{tpu_custom_call.1} parent=1 // pred_check
      _
    $region67: #{tpu_custom_call.1} parent=1 // pred_check_branch
      %141 = sbr.rel (0) target = $region69
    $region68: #{tpu_custom_call.1} parent=1 // pred_region
      %143 = dma.done [#allocation12], 2048
    $region69: #{tpu_custom_call.1} parent=1 // pred_fallthru
      _
    %v144 = vld [vmem:[#allocation2] sm:$0xff]
    %v145 = vld [vmem:[#allocation2 + $0x8] sm:$0xff]
    %v146 = vld [vmem:[#allocation2 + $0x10] sm:$0xff]
    %v147 = vld [vmem:[#allocation2 + $0x18] sm:$0xff]
    %v148 = vpack.c.bf16 %v146, %v144
    %v149 = vpack.c.bf16 %v147, %v145
    %v150 = vld [vmem:[#allocation8] sm:$0xf]
    %v151 = vld [vmem:[#allocation8 + $0x4] sm:$0xf]
    %v152 = vld [vmem:[#allocation8 + $0x8] sm:$0xf]
    %v153 = vld [vmem:[#allocation8 + $0xc] sm:$0xf]
    %v154 = vld [vmem:[#allocation8 + $0x10] sm:$0xf]
    %v155 = vld [vmem:[#allocation8 + $0x14] sm:$0xf]
    %v156 = vld [vmem:[#allocation8 + $0x18] sm:$0xf]
    %v157 = vld [vmem:[#allocation8 + $0x1c] sm:$0xf]
    %v158 = vld [vmem:[#allocation8 + $0x20] sm:$0xf]
    %v159 = vld [vmem:[#allocation8 + $0x24] sm:$0xf]
    %v160 = vld [vmem:[#allocation8 + $0x28] sm:$0xf]
    %v161 = vld [vmem:[#allocation8 + $0x2c] sm:$0xf]
    %v162 = vld [vmem:[#allocation8 + $0x30] sm:$0xf]
    %v163 = vld [vmem:[#allocation8 + $0x34] sm:$0xf]
    %v164 = vld [vmem:[#allocation8 + $0x38] sm:$0xf]
    %v165 = vld [vmem:[#allocation8 + $0x3c] sm:$0xf]
    %v166 = vld [vmem:[#allocation8 + $0x40] sm:$0xf]
    %v167 = vld [vmem:[#allocation8 + $0x44] sm:$0xf]
    %v168 = vld [vmem:[#allocation8 + $0x48] sm:$0xf]
    %v169 = vld [vmem:[#allocation8 + $0x4c] sm:$0xf]
    %v170 = vld [vmem:[#allocation8 + $0x50] sm:$0xf]
    %v171 = vld [vmem:[#allocation8 + $0x54] sm:$0xf]
    %v172 = vld [vmem:[#allocation8 + $0x58] sm:$0xf]
    %v173 = vld [vmem:[#allocation8 + $0x5c] sm:$0xf]
    %v174 = vld [vmem:[#allocation8 + $0x60] sm:$0xf]
    %v175 = vld [vmem:[#allocation8 + $0x64] sm:$0xf]
    %v176 = vld [vmem:[#allocation8 + $0x68] sm:$0xf]
    %v177 = vld [vmem:[#allocation8 + $0x6c] sm:$0xf]
    %v178 = vld [vmem:[#allocation8 + $0x70] sm:$0xf]
    %v179 = vld [vmem:[#allocation8 + $0x74] sm:$0xf]
    %v180 = vld [vmem:[#allocation8 + $0x78] sm:$0xf]
    %v181 = vld [vmem:[#allocation8 + $0x7c] sm:$0xf]
    %v182 = vld [vmem:[#allocation10] sm:$0x1]
    %v184 = vperm.slane %v182, 0
    %v218 = vunpack.c.l.b16 %v150
    %v219 = vunpack.c.l.b16 %v151
    %v220 = vunpack.c.l.b16 %v152
    %v221 = vunpack.c.l.b16 %v153
    %v222 = vunpack.c.l.b16 %v154
    %v223 = vunpack.c.l.b16 %v155
    %v224 = vunpack.c.l.b16 %v156
    %v225 = vunpack.c.l.b16 %v157
    %v226 = vunpack.c.l.b16 %v158
    %v227 = vunpack.c.l.b16 %v159
    %v228 = vunpack.c.l.b16 %v160
    %v229 = vunpack.c.l.b16 %v161
    %v230 = vunpack.c.l.b16 %v162
    %v231 = vunpack.c.l.b16 %v163
    %v232 = vunpack.c.l.b16 %v164
    %v233 = vunpack.c.l.b16 %v165
    %v234 = vunpack.c.l.b16 %v166
    %v235 = vunpack.c.l.b16 %v167
    %v236 = vunpack.c.l.b16 %v168
    %v237 = vunpack.c.l.b16 %v169
    %v238 = vunpack.c.l.b16 %v170
    %v239 = vunpack.c.l.b16 %v171
    %v240 = vunpack.c.l.b16 %v172
    %v241 = vunpack.c.l.b16 %v173
    %v242 = vunpack.c.l.b16 %v174
    %v243 = vunpack.c.l.b16 %v175
    %v244 = vunpack.c.l.b16 %v176
    %v245 = vunpack.c.l.b16 %v177
    %v246 = vunpack.c.l.b16 %v178
    %v247 = vunpack.c.l.b16 %v179
    %v248 = vunpack.c.l.b16 %v180
    %v249 = vunpack.c.l.b16 %v181
    %v250 = vpack.c.b16 %v219, %v218
    %v251 = vpack.c.b16 %v221, %v220
    %v252 = vpack.c.b16 %v223, %v222
    %v253 = vpack.c.b16 %v225, %v224
    %v254 = vpack.c.b16 %v227, %v226
    %v255 = vpack.c.b16 %v229, %v228
    %v256 = vpack.c.b16 %v231, %v230
    %v257 = vpack.c.b16 %v233, %v232
    %v258 = vpack.c.b16 %v235, %v234
    %v259 = vpack.c.b16 %v237, %v236
    %v260 = vpack.c.b16 %v239, %v238
    %v261 = vpack.c.b16 %v241, %v240
    %v262 = vpack.c.b16 %v243, %v242
    %v263 = vpack.c.b16 %v245, %v244
    %v264 = vpack.c.b16 %v247, %v246
    %v265 = vpack.c.b16 %v249, %v248
    %282 = vmatpush.bf16.msra.mxu0 %v257
    %283 = vmatpush.bf16.msra.mxu0 %v256
    %284 = vmatpush.bf16.msra.mxu0 %v255
    %285 = vmatpush.bf16.msra.mxu0 %v254
    %286 = vmatpush.bf16.msra.mxu0 %v253
    %287 = vmatpush.bf16.msra.mxu0 %v252
    %288 = vmatpush.bf16.msra.mxu0 %v251
    %289 = vmatpush.bf16.msra.mxu0 %v250
    %290 = vmatmul.bf16.gmra.mxu0 %v148
    %v291 = vpop.f32.mrf.mxu0
    %v292 = vadd.f32 %v184, %v291
    %v293 = vpop.f32.mrf.mxu0
    %v294 = vadd.f32 %v184, %v293
    %295 = vdwg.mxu0
    %296 = vmatpush.bf16.msra.mxu0 %v265
    %297 = vmatpush.bf16.msra.mxu0 %v264
    %298 = vmatpush.bf16.msra.mxu0 %v263
    %299 = vmatpush.bf16.msra.mxu0 %v262
    %300 = vmatpush.bf16.msra.mxu0 %v261
    %301 = vmatpush.bf16.msra.mxu0 %v260
    %302 = vmatpush.bf16.msra.mxu0 %v259
    %303 = vmatpush.bf16.msra.mxu0 %v258
    %304 = vmatmul.bf16.gmra.mxu0 %v149
    %v305 = vpop.f32.mrf.mxu0
    %v306 = vadd.f32 %v292, %v305
    %v307 = vpop.f32.mrf.mxu0
    %v308 = vadd.f32 %v294, %v307
    %309 = vdwg.mxu0
    %310 = vst [vmem:[#allocation14] sm:$0xff] %v306
    %311 = vst [vmem:[#allocation14 + $0x8] sm:$0xff] %v308
    %v312 = vld [vmem:[#allocation5] sm:$0xff]
    %v313 = vld [vmem:[#allocation5 + $0x8] sm:$0xff]
    %v314 = vld [vmem:[#allocation5 + $0x10] sm:$0xff]
    %v315 = vld [vmem:[#allocation5 + $0x18] sm:$0xff]
    %v316 = vadd.f32 %v144, %v312
    %v317 = vadd.f32 %v145, %v313
    %v318 = vadd.f32 %v146, %v314
    %v319 = vadd.f32 %v147, %v315
    %v320 = vadd.f32 %v316, %v317
    %321 = vadd.xlane.f32.xlu0 %v320
    %v322 = vpop.xlane.xlu0 %321
    %v323 = vadd.f32 %v318, %v319
    %324 = vadd.xlane.f32.xlu0 %v323
    %v325 = vpop.xlane.xlu0 %324
    %v326 = vrcp.pop 256.0
    %v327 = vmul.f32 256.0, %v326
    %v328 = vsub.f32 1.0, %v327
    %v329 = vmul.f32 %v326, %v328
    %v330 = vadd.f32 %v326, %v329
    %vm331 = vweird.f32 %v326
    %v332 = vsel %vm331, %v326, %v330
    %v333 = vmul.f32 %v322, %v332
    %v334 = vmul.f32 %v325, %v332
    %v335 = vmul.f32 %v316, %v316
    %v336 = vmul.f32 %v317, %v317
    %v337 = vmul.f32 %v318, %v318
    %v338 = vmul.f32 %v319, %v319
    %v339 = vadd.f32 %v335, %v336
    %340 = vadd.xlane.f32.xlu0 %v339
    %v341 = vpop.xlane.xlu0 %340
    %v342 = vadd.f32 %v337, %v338
    %343 = vadd.xlane.f32.xlu0 %v342
    %v344 = vpop.xlane.xlu0 %343
    %v345 = vmul.f32 %v341, %v332
    %v346 = vmul.f32 %v344, %v332
    %v347 = vmul.f32 %v333, %v333
    %v348 = vmul.f32 %v334, %v334
    %v349 = vsub.f32 %v345, %v347
    %v350 = vsub.f32 %v346, %v348
    %v351 = vsub.f32 %v316, %v333
    %v352 = vsub.f32 %v317, %v333
    %v353 = vsub.f32 %v318, %v334
    %v354 = vsub.f32 %v319, %v334
    %v355 = vadd.f32 %v349, 1e-12
    %v356 = vadd.f32 %v350, 1e-12
    %v357 = vrsqrt.pop %v355
    %v358 = vmul.f32 %v357, %v355
    %v359 = vmul.f32 %v358, %v357
    %v360 = vmul.f32 0.5, %v359
    %v361 = vsub.f32 1.5, %v360
    %v362 = vmul.f32 %v357, %v361
    %vm363 = vweird.f32 %v355
    %vm364 = vweird.f32 %v357
    %vm365 = vmor %vm363, %vm364
    %v366 = vsel %vm365, %v357, %v362
    %v367 = vrsqrt.pop %v356
    %v368 = vmul.f32 %v367, %v356
    %v369 = vmul.f32 %v368, %v367
    %v370 = vmul.f32 0.5, %v369
    %v371 = vsub.f32 1.5, %v370
    %v372 = vmul.f32 %v367, %v371
    %vm373 = vweird.f32 %v356
    %vm374 = vweird.f32 %v367
    %vm375 = vmor %vm373, %vm374
    %v376 = vsel %vm375, %v367, %v372
    %v377 = vmul.f32 %v351, %v366
    %v378 = vmul.f32 %v352, %v366
    %v379 = vmul.f32 %v353, %v376
    %v380 = vmul.f32 %v354, %v376
    %v381 = vld [vmem:[#allocation7] sm:$0x3]
    %v383 = vperm.slane %v381, 0
    %v384 = vperm.slane %v381, 1
    %v387 = vmul.f32 %v383, %v377
    %v388 = vmul.f32 %v384, %v378
    %v389 = vmul.f32 %v383, %v379
    %v390 = vmul.f32 %v384, %v380
    %v391 = vld [vmem:[%s3] sm:$0x3]
    %v393 = vperm.slane %v391, 0
    %v394 = vperm.slane %v391, 1
    %v397 = vadd.f32 %v387, %v393
    %v398 = vadd.f32 %v388, %v394
    %v399 = vadd.f32 %v389, %v393
    %v400 = vadd.f32 %v390, %v394
    %v401 = vpack.c.bf16 %v399, %v397
    %v402 = vpack.c.bf16 %v400, %v398
    %v403 = vld [vmem:[#allocation11] sm:$0xff]
    %v404 = vld [vmem:[#allocation11 + $0x8] sm:$0xff]
    %v405 = vld [vmem:[#allocation11 + $0x10] sm:$0xff]
    %v406 = vld [vmem:[#allocation11 + $0x18] sm:$0xff]
    %v407 = vld [vmem:[#allocation11 + $0x20] sm:$0xff]
    %v408 = vld [vmem:[#allocation11 + $0x28] sm:$0xff]
    %v409 = vld [vmem:[#allocation11 + $0x30] sm:$0xff]
    %v410 = vld [vmem:[#allocation11 + $0x38] sm:$0xff]
    %v411 = vld [vmem:[#allocation11 + $0x40] sm:$0xff]
    %v412 = vld [vmem:[#allocation11 + $0x48] sm:$0xff]
    %v413 = vld [vmem:[#allocation11 + $0x50] sm:$0xff]
    %v414 = vld [vmem:[#allocation11 + $0x58] sm:$0xff]
    %v415 = vld [vmem:[#allocation11 + $0x60] sm:$0xff]
    %v416 = vld [vmem:[#allocation11 + $0x68] sm:$0xff]
    %v417 = vld [vmem:[#allocation11 + $0x70] sm:$0xff]
    %v418 = vld [vmem:[#allocation11 + $0x78] sm:$0xff]
    %v419 = vld [vmem:[#allocation11 + $0x80] sm:$0xff]
    %v420 = vld [vmem:[#allocation11 + $0x88] sm:$0xff]
    %v421 = vld [vmem:[#allocation11 + $0x90] sm:$0xff]
    %v422 = vld [vmem:[#allocation11 + $0x98] sm:$0xff]
    %v423 = vld [vmem:[#allocation11 + $0xa0] sm:$0xff]
    %v424 = vld [vmem:[#allocation11 + $0xa8] sm:$0xff]
    %v425 = vld [vmem:[#allocation11 + $0xb0] sm:$0xff]
    %v426 = vld [vmem:[#allocation11 + $0xb8] sm:$0xff]
    %v427 = vld [vmem:[#allocation11 + $0xc0] sm:$0xff]
    %v428 = vld [vmem:[#allocation11 + $0xc8] sm:$0xff]
    %v429 = vld [vmem:[#allocation11 + $0xd0] sm:$0xff]
    %v430 = vld [vmem:[#allocation11 + $0xd8] sm:$0xff]
    %v431 = vld [vmem:[#allocation11 + $0xe0] sm:$0xff]
    %v432 = vld [vmem:[#allocation11 + $0xe8] sm:$0xff]
    %v433 = vld [vmem:[#allocation11 + $0xf0] sm:$0xff]
    %v434 = vld [vmem:[#allocation11 + $0xf8] sm:$0xff]
    %v435 = vld [vmem:[%s7] sm:$0x3]
    %v437 = vperm.slane %v435, 0
    %v438 = vperm.slane %v435, 1
    %v473 = vunpack.c.l.b16 %v403
    %v474 = vunpack.c.h.b16 %v403
    %v475 = vunpack.c.l.b16 %v404
    %v476 = vunpack.c.h.b16 %v404
    %v477 = vunpack.c.l.b16 %v405
    %v478 = vunpack.c.h.b16 %v405
    %v479 = vunpack.c.l.b16 %v406
    %v480 = vunpack.c.h.b16 %v406
    %v481 = vunpack.c.l.b16 %v407
    %v482 = vunpack.c.h.b16 %v407
    %v483 = vunpack.c.l.b16 %v408
    %v484 = vunpack.c.h.b16 %v408
    %v485 = vunpack.c.l.b16 %v409
    %v486 = vunpack.c.h.b16 %v409
    %v487 = vunpack.c.l.b16 %v410
    %v488 = vunpack.c.h.b16 %v410
    %v489 = vunpack.c.l.b16 %v411
    %v490 = vunpack.c.h.b16 %v411
    %v491 = vunpack.c.l.b16 %v412
    %v492 = vunpack.c.h.b16 %v412
    %v493 = vunpack.c.l.b16 %v413
    %v494 = vunpack.c.h.b16 %v413
    %v495 = vunpack.c.l.b16 %v414
    %v496 = vunpack.c.h.b16 %v414
    %v497 = vunpack.c.l.b16 %v415
    %v498 = vunpack.c.h.b16 %v415
    %v499 = vunpack.c.l.b16 %v416
    %v500 = vunpack.c.h.b16 %v416
    %v501 = vunpack.c.l.b16 %v417
    %v502 = vunpack.c.h.b16 %v417
    %v503 = vunpack.c.l.b16 %v418
    %v504 = vunpack.c.h.b16 %v418
    %v505 = vunpack.c.l.b16 %v419
    %v506 = vunpack.c.h.b16 %v419
    %v507 = vunpack.c.l.b16 %v420
    %v508 = vunpack.c.h.b16 %v420
    %v509 = vunpack.c.l.b16 %v421
    %v510 = vunpack.c.h.b16 %v421
    %v511 = vunpack.c.l.b16 %v422
    %v512 = vunpack.c.h.b16 %v422
    %v513 = vunpack.c.l.b16 %v423
    %v514 = vunpack.c.h.b16 %v423
    %v515 = vunpack.c.l.b16 %v424
    %v516 = vunpack.c.h.b16 %v424
    %v517 = vunpack.c.l.b16 %v425
    %v518 = vunpack.c.h.b16 %v425
    %v519 = vunpack.c.l.b16 %v426
    %v520 = vunpack.c.h.b16 %v426
    %v521 = vunpack.c.l.b16 %v427
    %v522 = vunpack.c.h.b16 %v427
    %v523 = vunpack.c.l.b16 %v428
    %v524 = vunpack.c.h.b16 %v428
    %v525 = vunpack.c.l.b16 %v429
    %v526 = vunpack.c.h.b16 %v429
    %v527 = vunpack.c.l.b16 %v430
    %v528 = vunpack.c.h.b16 %v430
    %v529 = vunpack.c.l.b16 %v431
    %v530 = vunpack.c.h.b16 %v431
    %v531 = vunpack.c.l.b16 %v432
    %v532 = vunpack.c.h.b16 %v432
    %v533 = vunpack.c.l.b16 %v433
    %v534 = vunpack.c.h.b16 %v433
    %v535 = vunpack.c.l.b16 %v434
    %v536 = vunpack.c.h.b16 %v434
    %v537 = vpack.c.b16 %v475, %v473
    %v538 = vpack.c.b16 %v476, %v474
    %v539 = vpack.c.b16 %v479, %v477
    %v540 = vpack.c.b16 %v480, %v478
    %v541 = vpack.c.b16 %v483, %v481
    %v542 = vpack.c.b16 %v484, %v482
    %v543 = vpack.c.b16 %v487, %v485
    %v544 = vpack.c.b16 %v488, %v486
    %v545 = vpack.c.b16 %v491, %v489
    %v546 = vpack.c.b16 %v492, %v490
    %v547 = vpack.c.b16 %v495, %v493
    %v548 = vpack.c.b16 %v496, %v494
    %v549 = vpack.c.b16 %v499, %v497
    %v550 = vpack.c.b16 %v500, %v498
    %v551 = vpack.c.b16 %v503, %v501
    %v552 = vpack.c.b16 %v504, %v502
    %v553 = vpack.c.b16 %v507, %v505
    %v554 = vpack.c.b16 %v508, %v506
    %v555 = vpack.c.b16 %v511, %v509
    %v556 = vpack.c.b16 %v512, %v510
    %v557 = vpack.c.b16 %v515, %v513
    %v558 = vpack.c.b16 %v516, %v514
    %v559 = vpack.c.b16 %v519, %v517
    %v560 = vpack.c.b16 %v520, %v518
    %v561 = vpack.c.b16 %v523, %v521
    %v562 = vpack.c.b16 %v524, %v522
    %v563 = vpack.c.b16 %v527, %v525
    %v564 = vpack.c.b16 %v528, %v526
    %v565 = vpack.c.b16 %v531, %v529
    %v566 = vpack.c.b16 %v532, %v530
    %v567 = vpack.c.b16 %v535, %v533
    %v568 = vpack.c.b16 %v536, %v534
    %601 = vmatpush.bf16.msra.mxu0 %v551
    %602 = vmatpush.bf16.msra.mxu0 %v549
    %603 = vmatpush.bf16.msra.mxu0 %v547
    %604 = vmatpush.bf16.msra.mxu0 %v545
    %605 = vmatpush.bf16.msra.mxu0 %v543
    %606 = vmatpush.bf16.msra.mxu0 %v541
    %607 = vmatpush.bf16.msra.mxu0 %v539
    %608 = vmatpush.bf16.msra.mxu0 %v537
    %609 = vmatmul.bf16.gmra.mxu0 %v401
    %v610 = vpop.f32.mrf.mxu0
    %v611 = vadd.f32 %v437, %v610
    %v612 = vpop.f32.mrf.mxu0
    %v613 = vadd.f32 %v437, %v612
    %614 = vdwg.mxu0
    %615 = vmatpush.bf16.msra.mxu0 %v567
    %616 = vmatpush.bf16.msra.mxu0 %v565
    %617 = vmatpush.bf16.msra.mxu0 %v563
    %618 = vmatpush.bf16.msra.mxu0 %v561
    %619 = vmatpush.bf16.msra.mxu0 %v559
    %620 = vmatpush.bf16.msra.mxu0 %v557
    %621 = vmatpush.bf16.msra.mxu0 %v555
    %622 = vmatpush.bf16.msra.mxu0 %v553
    %623 = vmatmul.bf16.gmra.mxu0 %v402
    %v624 = vpop.f32.mrf.mxu0
    %v625 = vadd.f32 %v611, %v624
    %v626 = vpop.f32.mrf.mxu0
    %v627 = vadd.f32 %v613, %v626
    %628 = vdwg.mxu0
    %629 = vmatpush.bf16.msra.mxu0 %v552
    %630 = vmatpush.bf16.msra.mxu0 %v550
    %631 = vmatpush.bf16.msra.mxu0 %v548
    %632 = vmatpush.bf16.msra.mxu0 %v546
    %633 = vmatpush.bf16.msra.mxu0 %v544
    %634 = vmatpush.bf16.msra.mxu0 %v542
    %635 = vmatpush.bf16.msra.mxu0 %v540
    %636 = vmatpush.bf16.msra.mxu0 %v538
    %637 = vmatmul.bf16.gmra.mxu0 %v401
    %v638 = vpop.f32.mrf.mxu0
    %v639 = vadd.f32 %v438, %v638
    %v640 = vpop.f32.mrf.mxu0
    %v641 = vadd.f32 %v438, %v640
    %642 = vdwg.mxu0
    %643 = vmatpush.bf16.msra.mxu0 %v568
    %644 = vmatpush.bf16.msra.mxu0 %v566
    %645 = vmatpush.bf16.msra.mxu0 %v564
    %646 = vmatpush.bf16.msra.mxu0 %v562
    %647 = vmatpush.bf16.msra.mxu0 %v560
    %648 = vmatpush.bf16.msra.mxu0 %v558
    %649 = vmatpush.bf16.msra.mxu0 %v556
    %650 = vmatpush.bf16.msra.mxu0 %v554
    %651 = vmatmul.bf16.gmra.mxu0 %v402
    %v652 = vpop.f32.mrf.mxu0
    %v653 = vadd.f32 %v639, %v652
    %v654 = vpop.f32.mrf.mxu0
    %v655 = vadd.f32 %v641, %v654
    %656 = vdwg.mxu0
    %v657 = vmax.f32 %v625, 0.0
    %v658 = vmax.f32 %v653, 0.0
    %v659 = vmax.f32 %v627, 0.0
    %v660 = vmax.f32 %v655, 0.0
    %v661 = vpack.c.bf16 %v659, %v657
    %v662 = vpack.c.bf16 %v660, %v658
    %v663 = vld [vmem:[#allocation13] sm:$0xf]
    %v664 = vld [vmem:[#allocation13 + $0x4] sm:$0xf]
    %v665 = vld [vmem:[#allocation13 + $0x8] sm:$0xf]
    %v666 = vld [vmem:[#allocation13 + $0xc] sm:$0xf]
    %v667 = vld [vmem:[#allocation13 + $0x10] sm:$0xf]
    %v668 = vld [vmem:[#allocation13 + $0x14] sm:$0xf]
    %v669 = vld [vmem:[#allocation13 + $0x18] sm:$0xf]
    %v670 = vld [vmem:[#allocation13 + $0x1c] sm:$0xf]
    %v671 = vld [vmem:[#allocation13 + $0x20] sm:$0xf]
    %v672 = vld [vmem:[#allocation13 + $0x24] sm:$0xf]
    %v673 = vld [vmem:[#allocation13 + $0x28] sm:$0xf]
    %v674 = vld [vmem:[#allocation13 + $0x2c] sm:$0xf]
    %v675 = vld [vmem:[#allocation13 + $0x30] sm:$0xf]
    %v676 = vld [vmem:[#allocation13 + $0x34] sm:$0xf]
    %v677 = vld [vmem:[#allocation13 + $0x38] sm:$0xf]
    %v678 = vld [vmem:[#allocation13 + $0x3c] sm:$0xf]
    %v679 = vld [vmem:[#allocation13 + $0x40] sm:$0xf]
    %v680 = vld [vmem:[#allocation13 + $0x44] sm:$0xf]
    %v681 = vld [vmem:[#allocation13 + $0x48] sm:$0xf]
    %v682 = vld [vmem:[#allocation13 + $0x4c] sm:$0xf]
    %v683 = vld [vmem:[#allocation13 + $0x50] sm:$0xf]
    %v684 = vld [vmem:[#allocation13 + $0x54] sm:$0xf]
    %v685 = vld [vmem:[#allocation13 + $0x58] sm:$0xf]
    %v686 = vld [vmem:[#allocation13 + $0x5c] sm:$0xf]
    %v687 = vld [vmem:[#allocation13 + $0x60] sm:$0xf]
    %v688 = vld [vmem:[#allocation13 + $0x64] sm:$0xf]
    %v689 = vld [vmem:[#allocation13 + $0x68] sm:$0xf]
    %v690 = vld [vmem:[#allocation13 + $0x6c] sm:$0xf]
    %v691 = vld [vmem:[#allocation13 + $0x70] sm:$0xf]
    %v692 = vld [vmem:[#allocation13 + $0x74] sm:$0xf]
    %v693 = vld [vmem:[#allocation13 + $0x78] sm:$0xf]
    %v694 = vld [vmem:[#allocation13 + $0x7c] sm:$0xf]
    %v695 = vld [vmem:[%s9] sm:$0x1]
    %v697 = vperm.slane %v695, 0
    %v731 = vunpack.c.l.b16 %v663
    %v732 = vunpack.c.l.b16 %v664
    %v733 = vunpack.c.l.b16 %v665
    %v734 = vunpack.c.l.b16 %v666
    %v735 = vunpack.c.l.b16 %v667
    %v736 = vunpack.c.l.b16 %v668
    %v737 = vunpack.c.l.b16 %v669
    %v738 = vunpack.c.l.b16 %v670
    %v739 = vunpack.c.l.b16 %v671
    %v740 = vunpack.c.l.b16 %v672
    %v741 = vunpack.c.l.b16 %v673
    %v742 = vunpack.c.l.b16 %v674
    %v743 = vunpack.c.l.b16 %v675
    %v744 = vunpack.c.l.b16 %v676
    %v745 = vunpack.c.l.b16 %v677
    %v746 = vunpack.c.l.b16 %v678
    %v747 = vunpack.c.l.b16 %v679
    %v748 = vunpack.c.l.b16 %v680
    %v749 = vunpack.c.l.b16 %v681
    %v750 = vunpack.c.l.b16 %v682
    %v751 = vunpack.c.l.b16 %v683
    %v752 = vunpack.c.l.b16 %v684
    %v753 = vunpack.c.l.b16 %v685
    %v754 = vunpack.c.l.b16 %v686
    %v755 = vunpack.c.l.b16 %v687
    %v756 = vunpack.c.l.b16 %v688
    %v757 = vunpack.c.l.b16 %v689
    %v758 = vunpack.c.l.b16 %v690
    %v759 = vunpack.c.l.b16 %v691
    %v760 = vunpack.c.l.b16 %v692
    %v761 = vunpack.c.l.b16 %v693
    %v762 = vunpack.c.l.b16 %v694
    %v763 = vpack.c.b16 %v732, %v731
    %v764 = vpack.c.b16 %v734, %v733
    %v765 = vpack.c.b16 %v736, %v735
    %v766 = vpack.c.b16 %v738, %v737
    %v767 = vpack.c.b16 %v740, %v739
    %v768 = vpack.c.b16 %v742, %v741
    %v769 = vpack.c.b16 %v744, %v743
    %v770 = vpack.c.b16 %v746, %v745
    %v771 = vpack.c.b16 %v748, %v747
    %v772 = vpack.c.b16 %v750, %v749
    %v773 = vpack.c.b16 %v752, %v751
    %v774 = vpack.c.b16 %v754, %v753
    %v775 = vpack.c.b16 %v756, %v755
    %v776 = vpack.c.b16 %v758, %v757
    %v777 = vpack.c.b16 %v760, %v759
    %v778 = vpack.c.b16 %v762, %v761
    %795 = vmatpush.bf16.msra.mxu0 %v770
    %796 = vmatpush.bf16.msra.mxu0 %v769
    %797 = vmatpush.bf16.msra.mxu0 %v768
    %798 = vmatpush.bf16.msra.mxu0 %v767
    %799 = vmatpush.bf16.msra.mxu0 %v766
    %800 = vmatpush.bf16.msra.mxu0 %v765
    %801 = vmatpush.bf16.msra.mxu0 %v764
    %802 = vmatpush.bf16.msra.mxu0 %v763
    %803 = vmatmul.bf16.gmra.mxu0 %v661
    %v804 = vpop.f32.mrf.mxu0
    %v805 = vadd.f32 %v697, %v804
    %v806 = vpop.f32.mrf.mxu0
    %v807 = vadd.f32 %v697, %v806
    %808 = vdwg.mxu0
    %809 = vmatpush.bf16.msra.mxu0 %v778
    %810 = vmatpush.bf16.msra.mxu0 %v777
    %811 = vmatpush.bf16.msra.mxu0 %v776
    %812 = vmatpush.bf16.msra.mxu0 %v775
    %813 = vmatpush.bf16.msra.mxu0 %v774
    %814 = vmatpush.bf16.msra.mxu0 %v773
    %815 = vmatpush.bf16.msra.mxu0 %v772
    %816 = vmatpush.bf16.msra.mxu0 %v771
    %817 = vmatmul.bf16.gmra.mxu0 %v662
    %v818 = vpop.f32.mrf.mxu0
    %v819 = vadd.f32 %v805, %v818
    %v820 = vpop.f32.mrf.mxu0
    %v821 = vadd.f32 %v807, %v820
    %822 = vdwg.mxu0
    %823 = vst [vmem:[#allocation15] sm:$0xff] %v819
    %824 = vst [vmem:[#allocation15 + $0x8] sm:$0xff] %v821
    // Predicated region
    $region70: #{tpu_custom_call.1} parent=1 // pred_check
      _
    $region71: #{tpu_custom_call.1} parent=1 // pred_check_branch
      %826 = sbr.rel (0) target = $region73
    $region72: #{tpu_custom_call.1} parent=1 // pred_region
      %828 = vsyncadd [#allocation4], 0
      %s829 = sshll.u32 [#allocation14], 4
      %s830 = int_to_ptr.vmem [resolvable:$true] %s829
      %s831 = sshll.u32 %s10, 4
      %s832 = int_to_ptr.hbm [resolvable:$true] %s831
      %837 = dma.vmem_to_hbm [thread:$0]  %s830, 256, %s832, [#allocation4], 128, 128, 8
    $region73: #{tpu_custom_call.1} parent=1 // pred_fallthru
      _
    // Predicated region
    $region74: #{tpu_custom_call.1} parent=1 // pred_check
      _
    $region75: #{tpu_custom_call.1} parent=1 // pred_check_branch
      %839 = sbr.rel (0) target = $region77
    $region76: #{tpu_custom_call.1} parent=1 // pred_region
      %841 = vsyncadd [#allocation16], 0
      %s842 = sshll.u32 [#allocation15], 4
      %s843 = int_to_ptr.vmem [resolvable:$true] %s842
      %s844 = sshll.u32 %s11, 4
      %s845 = int_to_ptr.hbm [resolvable:$true] %s844
      %850 = dma.vmem_to_hbm [thread:$0]  %s843, 256, %s845, [#allocation16], 128, 128, 8
    $region77: #{tpu_custom_call.1} parent=1 // pred_fallthru
      _
    // Predicated region
    $region78: #{tpu_custom_call.1} parent=1 // pred_check
      _
    $region79: #{tpu_custom_call.1} parent=1 // pred_check_branch
      %852 = sbr.rel (0) target = $region81
    $region80: #{tpu_custom_call.1} parent=1 // pred_region
      %854 = dma.done [#allocation4], 256
    $region81: #{tpu_custom_call.1} parent=1 // pred_fallthru
      _
    // Predicated region
    $region82: #{tpu_custom_call.1} parent=1 // pred_check
      _
    $region83: #{tpu_custom_call.1} parent=1 // pred_check_branch
      %856 = sbr.rel (0) target = $region85
    $region84: #{tpu_custom_call.1} parent=1 // pred_region
      %858 = dma.done [#allocation16], 256
    $region85: #{tpu_custom_call.1} parent=1 // pred_fallthru
      _
    %859 = vsyncpa [#allocation3], 1
    %860 = vsyncpa [#allocation6], 1
    %861 = vsyncpa [#allocation9], 1
    %862 = vsyncpa [#allocation12], 1
    %863 = vsyncpa [#allocation4], 1
    %864 = vsyncpa [#allocation16], 1

</llo_original>
